<compile_context>
chip_gen: v5e
topology: v5e:2x2
jax: 0.10.0
libtpu: 0.0.40
codegen_flags: <defaults>
</compile_context>

<pallas_src>
import jax
import jax.numpy as jnp
import numpy as np
from jax import lax
from jax.experimental import pallas as pl
from jax.experimental.pallas import tpu as pltpu


def _mlp_kernel(x_ref, w1_ref, b1_ref, w2_ref, b2_ref, o_ref):
    # Shapes per grid step (G weight sets at a time):
    #   x_ref  (B, I)            w1_ref (G, H, I)     b1_ref (G, 1, H)
    #   w2_ref (G, Opad, H)      b2_ref (G, 1, Opad)  o_ref  (G, B, Opad)
    G = w1_ref.shape[0]
    x = x_ref[...]                                        # (B, I)
    xg = jnp.broadcast_to(x[None], (G,) + x.shape)        # (G, B, I), VMEM-only replicate

    # Layer 1: per-set x @ w1.T, batched over G (NT matmul: contract last dims).
    h = lax.dot_general(xg, w1_ref[...],
                        dimension_numbers=(((2,), (2,)), ((0,), (0,))),
                        preferred_element_type=jnp.float32)   # (G, B, H) f32
    h = jnp.maximum(h + b1_ref[...], 0.0)                     # bias + ReLU on VPU

    # Layer 2: per-set h @ w2.T, keeping the f32 accumulator (no implicit downcast).
    o = lax.dot_general(h, w2_ref[...],
                        dimension_numbers=(((2,), (2,)), ((0,), (0,))),
                        preferred_element_type=jnp.float32)   # (G, B, Opad) f32
    o_ref[...] = (o + b2_ref[...]).astype(o_ref.dtype)        # lane-dense store


def _pick_group_size(n, per_set_bytes, vmem_budget_bytes=8 << 20):
    """Largest divisor of n whose double-buffered block fits a modest VMEM budget."""
    cap = max(1, min(n, vmem_budget_bytes // max(per_set_bytes, 1)))
    g = cap
    while n % g:
        g -= 1
    return g


@jax.jit
def _forward_batched_impl(x, w1, b1, w2, b2):
    B, I = x.shape
    N, H, _ = w1.shape
    O = w2.shape[1]

    # Lane-dense output: pad O up to a multiple of 128 (zero padding, sliced off at
    # the end).  Under jit the pad / slice fuse with the surrounding graph.
    O_pad = ((O + 127) // 128) * 128
    if O_pad != O:
        w2 = jnp.pad(w2, ((0, 0), (0, O_pad - O), (0, 0)))
        b2 = jnp.pad(b2, ((0, 0), (0, O_pad - O)))

    # Size-1 dim inserts only (no data movement).
    b1_3d = b1[:, None, :]       # (N, 1, H)
    b2_3d = b2[:, None, :]       # (N, 1, O_pad)

    itemsize = jnp.dtype(x.dtype).itemsize
    per_set_bytes = itemsize * (H * I + H + O_pad * H + O_pad + B * O_pad)
    G = _pick_group_size(N, per_set_bytes)      # static (shape-derived) Python int
    grid = (N // G,)

    cost = pl.CostEstimate(
        flops=2 * N * B * (I * H + H * O_pad),
        transcendentals=0,
        bytes_accessed=itemsize * (x.size + w1.size + b1_3d.size
                                   + w2.size + b2_3d.size + N * B * O_pad),
    )

    out = pl.pallas_call(
        _mlp_kernel,
        out_shape=jax.ShapeDtypeStruct((N, B, O_pad), x.dtype),
        grid=grid,
        in_specs=[
            pl.BlockSpec((B, I), lambda n: (0, 0)),            # x shared by all sets
            pl.BlockSpec((G, H, I), lambda n: (n, 0, 0)),      # G weight sets: w1
            pl.BlockSpec((G, 1, H), lambda n: (n, 0, 0)),      # G weight sets: b1
            pl.BlockSpec((G, O_pad, H), lambda n: (n, 0, 0)),  # G weight sets: w2 (padded)
            pl.BlockSpec((G, 1, O_pad), lambda n: (n, 0, 0)),  # G weight sets: b2 (padded)
        ],
        out_specs=pl.BlockSpec((G, B, O_pad), lambda n: (n, 0, 0)),
        compiler_params=pltpu.CompilerParams(
            dimension_semantics=("parallel",),   # shards across v7x's 2 TCs; free on v5e/v6e
        ),
        cost_estimate=cost,
    )(x, w1, b1_3d, w2, b2_3d)

    return out[:, :, :O] if O_pad != O else out


def target_network_forward_batched(x, weights):
    """Evaluate N target networks (N weight sets) on the same input batch in one call.

    x:       (B, I) float32
    weights: (w1, b1, w2, b2) with shapes (N, H, I), (N, H), (N, O, H), (N, O)
    returns: (N, B, O)
    """
    w1, b1, w2, b2 = weights
    return _forward_batched_impl(x, w1, b1, w2, b2)


def target_network_forward(x, weights):
    """Drop-in equivalent of TargetNetwork.forward(x, weights) for a single weight set.

    x: (B, I);  weights = (w1 (H, I), b1 (H,), w2 (O, H), b2 (O,))
    """
    w1, b1, w2, b2 = weights
    out = target_network_forward_batched(
        x, (w1[None], b1[None], w2[None], b2[None]))
    return out[0]


if __name__ == "__main__":
    # Deterministic synthetic setup (the hypernetwork would generate these weights;
    # here we sample N independent weight sets in-script).
    batch = 8
    input_size = 32
    hidden_size = 64
    output_size = 16
    num_nets = 8          # N target networks evaluated in one gridded pallas_call

    key = jax.random.PRNGKey(0)
    kx, k1, k2, k3, k4 = jax.random.split(key, 5)

    x = jax.random.normal(kx, (batch, input_size), dtype=jnp.float32)
    w1 = jax.random.normal(k1, (num_nets, hidden_size, input_size), jnp.float32) * 0.1
    b1 = jax.random.normal(k2, (num_nets, hidden_size), jnp.float32) * 0.1
    w2 = jax.random.normal(k3, (num_nets, output_size, hidden_size), jnp.float32) * 0.1
    b2 = jax.random.normal(k4, (num_nets, output_size), jnp.float32) * 0.1

    # Batched path: N weight sets in one kernel launch.
    out_batched = target_network_forward_batched(x, (w1, b1, w2, b2))
    out_batched = jax.block_until_ready(out_batched)

    # Pure-JAX reference (same math as the PyTorch module, per weight set).
    h_ref = jnp.maximum(jnp.einsum('bi,nhi->nbh', x, w1) + b1[:, None, :], 0.0)
    ref = jnp.einsum('nbh,noh->nbo', h_ref, w2) + b2[:, None, :]
    np.testing.assert_allclose(np.asarray(out_batched), np.asarray(ref),
                               rtol=1e-5, atol=1e-5)

    # Single-set path (exact module signature).
    out_single = target_network_forward(x, (w1[0], b1[0], w2[0], b2[0]))
    out_single = jax.block_until_ready(out_single)
    np.testing.assert_allclose(np.asarray(out_single), np.asarray(ref[0]),
                               rtol=1e-5, atol=1e-5)

    print("KERNEL_OK")
</pallas_src>

<mosaic_0001>
module attributes {stable_mosaic.version = 11 : i64} {
  func.func @_mlp_kernel(%arg0: i32, %arg1: memref<8x32xf32, #tpu.memory_space<vmem>>, %arg2: memref<8x64x32xf32, #tpu.memory_space<vmem>>, %arg3: memref<8x1x64xf32, #tpu.memory_space<vmem>>, %arg4: memref<8x128x64xf32, #tpu.memory_space<vmem>>, %arg5: memref<8x1x128xf32, #tpu.memory_space<vmem>>, %arg6: memref<8x8x128xf32, #tpu.memory_space<vmem>>) attributes {dimension_semantics = [#tpu.dimension_semantics<parallel>], iteration_bounds = array<i64: 1>, scalar_prefetch = 0 : i64, scratch_operands = 0 : i64, tpu.core_type = #tpu.core_type<tc>, window_params = [{pipeline_mode = #tpu.pipeline_mode<synchronous>, transform_indices = @transform_0, window_bounds = array<i64: 8, 32>}, {transform_indices = @transform_1, window_bounds = array<i64: 8, 64, 32>}, {transform_indices = @transform_2, window_bounds = array<i64: 8, 1, 64>}, {transform_indices = @transform_3, window_bounds = array<i64: 8, 128, 64>}, {transform_indices = @transform_4, window_bounds = array<i64: 8, 1, 128>}, {transform_indices = @transform_5, window_bounds = array<i64: 8, 8, 128>}]} {
    %c0 = arith.constant 0 : index
    %c0_0 = arith.constant 0 : index
    %0 = vector.load %arg1[%c0, %c0_0] : memref<8x32xf32, #tpu.memory_space<vmem>>, vector<8x32xf32>
    %1 = vector.shape_cast %0 : vector<8x32xf32> to vector<1x8x32xf32>
    %2 = vector.shape_cast %1 : vector<1x8x32xf32> to vector<1x8x32xf32>
    %3 = vector.broadcast %2 : vector<1x8x32xf32> to vector<8x8x32xf32>
    %c0_1 = arith.constant 0 : index
    %c0_2 = arith.constant 0 : index
    %c0_3 = arith.constant 0 : index
    %4 = vector.load %arg2[%c0_1, %c0_2, %c0_3] : memref<8x64x32xf32, #tpu.memory_space<vmem>>, vector<8x64x32xf32>
    %cst = arith.constant dense<0.000000e+00> : vector<8x8x64xf32>
    %5 = tpu.matmul %3, %4, %cst {dimension_numbers = #tpu.dot_dimension_numbers<[2], [2], [1], [1], [0, 0, 0, 1, 1, 1], [0], [0]>} : vector<8x8x32xf32>, vector<8x64x32xf32>, vector<8x8x64xf32> -> vector<8x8x64xf32>
    %c0_4 = arith.constant 0 : index
    %c0_5 = arith.constant 0 : index
    %c0_6 = arith.constant 0 : index
    %6 = vector.load %arg3[%c0_4, %c0_5, %c0_6] : memref<8x1x64xf32, #tpu.memory_space<vmem>>, vector<8x1x64xf32>
    %7 = vector.broadcast %6 : vector<8x1x64xf32> to vector<8x8x64xf32>
    %8 = arith.addf %5, %7 : vector<8x8x64xf32>
    %cst_7 = arith.constant 0.000000e+00 : f32
    %9 = vector.broadcast %cst_7 : f32 to vector<8x8x64xf32>
    %10 = arith.maximumf %8, %9 : vector<8x8x64xf32>
    %c0_8 = arith.constant 0 : index
    %c0_9 = arith.constant 0 : index
    %c0_10 = arith.constant 0 : index
    %11 = vector.load %arg4[%c0_8, %c0_9, %c0_10] : memref<8x128x64xf32, #tpu.memory_space<vmem>>, vector<8x128x64xf32>
    %cst_11 = arith.constant dense<0.000000e+00> : vector<8x8x128xf32>
    %12 = tpu.matmul %10, %11, %cst_11 {dimension_numbers = #tpu.dot_dimension_numbers<[2], [2], [1], [1], [0, 0, 0, 1, 1, 1], [0], [0]>} : vector<8x8x64xf32>, vector<8x128x64xf32>, vector<8x8x128xf32> -> vector<8x8x128xf32>
    %c0_12 = arith.constant 0 : index
    %c0_13 = arith.constant 0 : index
    %c0_14 = arith.constant 0 : index
    %13 = vector.load %arg5[%c0_12, %c0_13, %c0_14] : memref<8x1x128xf32, #tpu.memory_space<vmem>>, vector<8x1x128xf32>
    %14 = vector.broadcast %13 : vector<8x1x128xf32> to vector<8x8x128xf32>
    %15 = arith.addf %12, %14 : vector<8x8x128xf32>
    %c0_15 = arith.constant 0 : index
    %c0_16 = arith.constant 0 : index
    %c0_17 = arith.constant 0 : index
    %16 = vector.load %arg6[%c0_15, %c0_16, %c0_17] : memref<8x8x128xf32, #tpu.memory_space<vmem>>, vector<8x8x128xf32>
    tpu.vector_store %arg6[%c0_15, %c0_16, %c0_17], %15 {strides = array<i32>} : memref<8x8x128xf32, #tpu.memory_space<vmem>>, vector<8x8x128xf32>,
    return
  }
  func.func @transform_0(%arg0: i32) -> (i32, i32) {
    %c0_i32 = arith.constant 0 : i32
    %c0_i32_0 = arith.constant 0 : i32
    %c0_i32_1 = arith.constant 0 : i32
    return %c0_i32, %c0_i32_0 : i32, i32
  }
  func.func @transform_1(%arg0: i32) -> (i32, i32, i32) {
    %c0_i32 = arith.constant 0 : i32
    %c0_i32_0 = arith.constant 0 : i32
    %c0_i32_1 = arith.constant 0 : i32
    return %arg0, %c0_i32, %c0_i32_0 : i32, i32, i32
  }
  func.func @transform_2(%arg0: i32) -> (i32, i32, i32) {
    %c0_i32 = arith.constant 0 : i32
    %c0_i32_0 = arith.constant 0 : i32
    %c0_i32_1 = arith.constant 0 : i32
    return %arg0, %c0_i32, %c0_i32_0 : i32, i32, i32
  }
  func.func @transform_3(%arg0: i32) -> (i32, i32, i32) {
    %c0_i32 = arith.constant 0 : i32
    %c0_i32_0 = arith.constant 0 : i32
    %c0_i32_1 = arith.constant 0 : i32
    return %arg0, %c0_i32, %c0_i32_0 : i32, i32, i32
  }
  func.func @transform_4(%arg0: i32) -> (i32, i32, i32) {
    %c0_i32 = arith.constant 0 : i32
    %c0_i32_0 = arith.constant 0 : i32
    %c0_i32_1 = arith.constant 0 : i32
    return %arg0, %c0_i32, %c0_i32_0 : i32, i32, i32
  }
  func.func @transform_5(%arg0: i32) -> (i32, i32, i32) {
    %c0_i32 = arith.constant 0 : i32
    %c0_i32_0 = arith.constant 0 : i32
    %c0_i32_1 = arith.constant 0 : i32
    return %arg0, %c0_i32, %c0_i32_0 : i32, i32, i32
  }
}

</mosaic_0001>

<llo_original>
// kernel: _forward_batched_impl.1
$region0: #{_forward_batched_impl.1}
  #allocation0 [shape = 'u32[]', space=smem, size = 0x4, offset = 0x4, fixed_abs, tag = 'smem constant byte address 0x4 - core index']
  #allocation1 [shape = 'u32[72,128]{1,0:T(1,128)}', space=vmem, size = 0x9000, scoped, tag = 'internal scratch']
  %s0 = inlined_call_operand.vmem [shape: f32[8,32], index: 0, kind: input, shape index: {}]
  %s1 = inlined_call_operand.vmem [shape: f32[8,64,32], index: 1, kind: input, shape index: {}]
  %s2 = inlined_call_operand.vmem [shape: f32[8,1,64], index: 2, kind: input, shape index: {}]
  %s3 = inlined_call_operand.vmem [shape: f32[8,128,64], index: 3, kind: input, shape index: {}]
  %s4 = inlined_call_operand.vmem [shape: f32[8,1,128], index: 4, kind: input, shape index: {}]
  %s5 = inlined_call_operand.hbm [shape: f32[8,8,128], index: 5, kind: output, shape index: {}]
  %s6 = sld [smem:[#allocation0]]
  $region30: #{_forward_batched_impl.1} parent=0
    _
  %s8 = ssub.s32 1, %s6
  %s9 = scalar_select 0, %s8, %s6
  $region1: #{_forward_batched_impl.1} parent=0
    #allocation2 [shape = 'u8[32768]{0}', space=vmem, size = 0x8000, scoped, tag = 'output window, operand 0, single buffered']
    #allocation3 [shape = 's32[1]{0}', space=sflag, size = 0x4, scoped, tag = 'scoped memory for _forward_batched_impl.1']
    %10 = vsyncpa [#allocation3], 0
    // Predicated region
    $region2: #{_forward_batched_impl.1} parent=1 // pred_check
      _
    $region3: #{_forward_batched_impl.1} parent=1 // pred_check_branch
      %12 = sbr.rel (0) target = $region5
    $region4: #{_forward_batched_impl.1} parent=1 // pred_region
      _
    $region5: #{_forward_batched_impl.1} parent=1 // pred_fallthru
      _
    // Predicated region
    $region6: #{_forward_batched_impl.1} parent=1 // pred_check
      _
    $region7: #{_forward_batched_impl.1} parent=1 // pred_check_branch
      %14 = sbr.rel (0) target = $region9
    $region8: #{_forward_batched_impl.1} parent=1 // pred_region
      _
    $region9: #{_forward_batched_impl.1} parent=1 // pred_fallthru
      _
    // Predicated region
    $region10: #{_forward_batched_impl.1} parent=1 // pred_check
      _
    $region11: #{_forward_batched_impl.1} parent=1 // pred_check_branch
      %16 = sbr.rel (0) target = $region13
    $region12: #{_forward_batched_impl.1} parent=1 // pred_region
      _
    $region13: #{_forward_batched_impl.1} parent=1 // pred_fallthru
      _
    // Predicated region
    $region14: #{_forward_batched_impl.1} parent=1 // pred_check
      _
    $region15: #{_forward_batched_impl.1} parent=1 // pred_check_branch
      %18 = sbr.rel (0) target = $region17
    $region16: #{_forward_batched_impl.1} parent=1 // pred_region
      _
    $region17: #{_forward_batched_impl.1} parent=1 // pred_fallthru
      _
    // Predicated region
    $region18: #{_forward_batched_impl.1} parent=1 // pred_check
      _
    $region19: #{_forward_batched_impl.1} parent=1 // pred_check_branch
      %20 = sbr.rel (0) target = $region21
    $region20: #{_forward_batched_impl.1} parent=1 // pred_region
      _
    $region21: #{_forward_batched_impl.1} parent=1 // pred_fallthru
      _
    %v21 = vld [vmem:[%s0] sm:$0xff]
    %v22 = vld [vmem:[%s1] sm:$0xff]
    %v23 = vld [vmem:[%s1 + $0x8] sm:$0xff]
    %v24 = vld [vmem:[%s1 + $0x10] sm:$0xff]
    %v25 = vld [vmem:[%s1 + $0x18] sm:$0xff]
    %v26 = vld [vmem:[%s1 + $0x20] sm:$0xff]
    %v27 = vld [vmem:[%s1 + $0x28] sm:$0xff]
    %v28 = vld [vmem:[%s1 + $0x30] sm:$0xff]
    %v29 = vld [vmem:[%s1 + $0x38] sm:$0xff]
    %v30 = vld [vmem:[%s1 + $0x40] sm:$0xff]
    %v31 = vld [vmem:[%s1 + $0x48] sm:$0xff]
    %v32 = vld [vmem:[%s1 + $0x50] sm:$0xff]
    %v33 = vld [vmem:[%s1 + $0x58] sm:$0xff]
    %v34 = vld [vmem:[%s1 + $0x60] sm:$0xff]
    %v35 = vld [vmem:[%s1 + $0x68] sm:$0xff]
    %v36 = vld [vmem:[%s1 + $0x70] sm:$0xff]
    %v37 = vld [vmem:[%s1 + $0x78] sm:$0xff]
    %v38 = vld [vmem:[%s1 + $0x80] sm:$0xff]
    %v39 = vld [vmem:[%s1 + $0x88] sm:$0xff]
    %v40 = vld [vmem:[%s1 + $0x90] sm:$0xff]
    %v41 = vld [vmem:[%s1 + $0x98] sm:$0xff]
    %v42 = vld [vmem:[%s1 + $0xa0] sm:$0xff]
    %v43 = vld [vmem:[%s1 + $0xa8] sm:$0xff]
    %v44 = vld [vmem:[%s1 + $0xb0] sm:$0xff]
    %v45 = vld [vmem:[%s1 + $0xb8] sm:$0xff]
    %v46 = vld [vmem:[%s1 + $0xc0] sm:$0xff]
    %v47 = vld [vmem:[%s1 + $0xc8] sm:$0xff]
    %v48 = vld [vmem:[%s1 + $0xd0] sm:$0xff]
    %v49 = vld [vmem:[%s1 + $0xd8] sm:$0xff]
    %v50 = vld [vmem:[%s1 + $0xe0] sm:$0xff]
    %v51 = vld [vmem:[%s1 + $0xe8] sm:$0xff]
    %v52 = vld [vmem:[%s1 + $0xf0] sm:$0xff]
    %v53 = vld [vmem:[%s1 + $0xf8] sm:$0xff]
    %v54 = vld [vmem:[%s1 + $0x100] sm:$0xff]
    %v55 = vld [vmem:[%s1 + $0x108] sm:$0xff]
    %v56 = vld [vmem:[%s1 + $0x110] sm:$0xff]
    %v57 = vld [vmem:[%s1 + $0x118] sm:$0xff]
    %v58 = vld [vmem:[%s1 + $0x120] sm:$0xff]
    %v59 = vld [vmem:[%s1 + $0x128] sm:$0xff]
    %v60 = vld [vmem:[%s1 + $0x130] sm:$0xff]
    %v61 = vld [vmem:[%s1 + $0x138] sm:$0xff]
    %v62 = vld [vmem:[%s1 + $0x140] sm:$0xff]
    %v63 = vld [vmem:[%s1 + $0x148] sm:$0xff]
    %v64 = vld [vmem:[%s1 + $0x150] sm:$0xff]
    %v65 = vld [vmem:[%s1 + $0x158] sm:$0xff]
    %v66 = vld [vmem:[%s1 + $0x160] sm:$0xff]
    %v67 = vld [vmem:[%s1 + $0x168] sm:$0xff]
    %v68 = vld [vmem:[%s1 + $0x170] sm:$0xff]
    %v69 = vld [vmem:[%s1 + $0x178] sm:$0xff]
    %v70 = vld [vmem:[%s1 + $0x180] sm:$0xff]
    %v71 = vld [vmem:[%s1 + $0x188] sm:$0xff]
    %v72 = vld [vmem:[%s1 + $0x190] sm:$0xff]
    %v73 = vld [vmem:[%s1 + $0x198] sm:$0xff]
    %v74 = vld [vmem:[%s1 + $0x1a0] sm:$0xff]
    %v75 = vld [vmem:[%s1 + $0x1a8] sm:$0xff]
    %v76 = vld [vmem:[%s1 + $0x1b0] sm:$0xff]
    %v77 = vld [vmem:[%s1 + $0x1b8] sm:$0xff]
    %v78 = vld [vmem:[%s1 + $0x1c0] sm:$0xff]
    %v79 = vld [vmem:[%s1 + $0x1c8] sm:$0xff]
    %v80 = vld [vmem:[%s1 + $0x1d0] sm:$0xff]
    %v81 = vld [vmem:[%s1 + $0x1d8] sm:$0xff]
    %v82 = vld [vmem:[%s1 + $0x1e0] sm:$0xff]
    %v83 = vld [vmem:[%s1 + $0x1e8] sm:$0xff]
    %v84 = vld [vmem:[%s1 + $0x1f0] sm:$0xff]
    %v85 = vld [vmem:[%s1 + $0x1f8] sm:$0xff]
    %v86 = vld [vmem:[%s2] sm:$0x1]
    %v87 = vld [vmem:[%s2 + $0x1] sm:$0x1]
    %v88 = vld [vmem:[%s2 + $0x2] sm:$0x1]
    %v89 = vld [vmem:[%s2 + $0x3] sm:$0x1]
    %v90 = vld [vmem:[%s2 + $0x4] sm:$0x1]
    %v91 = vld [vmem:[%s2 + $0x5] sm:$0x1]
    %v92 = vld [vmem:[%s2 + $0x6] sm:$0x1]
    %v93 = vld [vmem:[%s2 + $0x7] sm:$0x1]
    %v102 = vperm.slane %v86, 0
    %v103 = vperm.slane %v87, 0
    %v104 = vperm.slane %v88, 0
    %v105 = vperm.slane %v89, 0
    %v106 = vperm.slane %v90, 0
    %v107 = vperm.slane %v91, 0
    %v108 = vperm.slane %v92, 0
    %v109 = vperm.slane %v93, 0
    %vm118 = vcmask 261120
    %v120 = vsel %vm118, %v21, 0
    %v123 = vsel %vm118, %v22, 0
    %v126 = vsel %vm118, %v23, 0
    %v129 = vsel %vm118, %v24, 0
    %v132 = vsel %vm118, %v25, 0
    %v135 = vsel %vm118, %v26, 0
    %v138 = vsel %vm118, %v27, 0
    %v141 = vsel %vm118, %v28, 0
    %v144 = vsel %vm118, %v29, 0
    %146 = vmatpush.xpose.msra.mxu0 0.0
    %147 = vmatpush.xpose.msra.mxu0 0.0
    %148 = vmatpush.xpose.msra.mxu0 0.0
    %149 = vmatpush.xpose.msra.mxu0 0.0
    %150 = vmatpush.xpose.msra.mxu0 0.0
    %151 = vmatpush.xpose.msra.mxu0 0.0
    %152 = vmatpush.xpose.msra.mxu0 0.0
    %153 = vmatpush.xpose.msra.mxu0 0.0
    %154 = vmatpush.xpose.msra.mxu0 %v144
    %155 = vmatpush.xpose.msra.mxu0 %v141
    %156 = vmatpush.xpose.msra.mxu0 %v138
    %157 = vmatpush.xpose.msra.mxu0 %v135
    %158 = vmatpush.xpose.msra.mxu0 %v132
    %159 = vmatpush.xpose.msra.mxu0 %v129
    %160 = vmatpush.xpose.msra.mxu0 %v126
    %161 = vmatpush.xpose.msra.mxu0 %v123
    %162 = vmatmul.f32.gmra.mxu0 %v120
    %v163 = vpop.f32.mrf.mxu0
    %v164 = vadd.f32 %v102, %v163
    %165 = vdwg.mxu0
    %v167 = vsel %vm118, %v30, 0
    %v170 = vsel %vm118, %v31, 0
    %v173 = vsel %vm118, %v32, 0
    %v176 = vsel %vm118, %v33, 0
    %v179 = vsel %vm118, %v34, 0
    %v182 = vsel %vm118, %v35, 0
    %v185 = vsel %vm118, %v36, 0
    %v188 = vsel %vm118, %v37, 0
    %190 = vmatpush.xpose.msra.mxu0 0.0
    %191 = vmatpush.xpose.msra.mxu0 0.0
    %192 = vmatpush.xpose.msra.mxu0 0.0
    %193 = vmatpush.xpose.msra.mxu0 0.0
    %194 = vmatpush.xpose.msra.mxu0 0.0
    %195 = vmatpush.xpose.msra.mxu0 0.0
    %196 = vmatpush.xpose.msra.mxu0 0.0
    %197 = vmatpush.xpose.msra.mxu0 0.0
    %198 = vmatpush.xpose.msra.mxu0 %v188
    %199 = vmatpush.xpose.msra.mxu0 %v185
    %200 = vmatpush.xpose.msra.mxu0 %v182
    %201 = vmatpush.xpose.msra.mxu0 %v179
    %202 = vmatpush.xpose.msra.mxu0 %v176
    %203 = vmatpush.xpose.msra.mxu0 %v173
    %204 = vmatpush.xpose.msra.mxu0 %v170
    %205 = vmatpush.xpose.msra.mxu0 %v167
    %206 = vmatmul.f32.gmra.mxu0 %v120
    %v207 = vpop.f32.mrf.mxu0
    %v208 = vadd.f32 %v103, %v207
    %209 = vdwg.mxu0
    %v211 = vsel %vm118, %v38, 0
    %v214 = vsel %vm118, %v39, 0
    %v217 = vsel %vm118, %v40, 0
    %v220 = vsel %vm118, %v41, 0
    %v223 = vsel %vm118, %v42, 0
    %v226 = vsel %vm118, %v43, 0
    %v229 = vsel %vm118, %v44, 0
    %v232 = vsel %vm118, %v45, 0
    %234 = vmatpush.xpose.msra.mxu0 0.0
    %235 = vmatpush.xpose.msra.mxu0 0.0
    %236 = vmatpush.xpose.msra.mxu0 0.0
    %237 = vmatpush.xpose.msra.mxu0 0.0
    %238 = vmatpush.xpose.msra.mxu0 0.0
    %239 = vmatpush.xpose.msra.mxu0 0.0
    %240 = vmatpush.xpose.msra.mxu0 0.0
    %241 = vmatpush.xpose.msra.mxu0 0.0
    %242 = vmatpush.xpose.msra.mxu0 %v232
    %243 = vmatpush.xpose.msra.mxu0 %v229
    %244 = vmatpush.xpose.msra.mxu0 %v226
    %245 = vmatpush.xpose.msra.mxu0 %v223
    %246 = vmatpush.xpose.msra.mxu0 %v220
    %247 = vmatpush.xpose.msra.mxu0 %v217
    %248 = vmatpush.xpose.msra.mxu0 %v214
    %249 = vmatpush.xpose.msra.mxu0 %v211
    %250 = vmatmul.f32.gmra.mxu0 %v120
    %v251 = vpop.f32.mrf.mxu0
    %v252 = vadd.f32 %v104, %v251
    %253 = vdwg.mxu0
    %v255 = vsel %vm118, %v46, 0
    %v258 = vsel %vm118, %v47, 0
    %v261 = vsel %vm118, %v48, 0
    %v264 = vsel %vm118, %v49, 0
    %v267 = vsel %vm118, %v50, 0
    %v270 = vsel %vm118, %v51, 0
    %v273 = vsel %vm118, %v52, 0
    %v276 = vsel %vm118, %v53, 0
    %278 = vmatpush.xpose.msra.mxu0 0.0
    %279 = vmatpush.xpose.msra.mxu0 0.0
    %280 = vmatpush.xpose.msra.mxu0 0.0
    %281 = vmatpush.xpose.msra.mxu0 0.0
    %282 = vmatpush.xpose.msra.mxu0 0.0
    %283 = vmatpush.xpose.msra.mxu0 0.0
    %284 = vmatpush.xpose.msra.mxu0 0.0
    %285 = vmatpush.xpose.msra.mxu0 0.0
    %286 = vmatpush.xpose.msra.mxu0 %v276
    %287 = vmatpush.xpose.msra.mxu0 %v273
    %288 = vmatpush.xpose.msra.mxu0 %v270
    %289 = vmatpush.xpose.msra.mxu0 %v267
    %290 = vmatpush.xpose.msra.mxu0 %v264
    %291 = vmatpush.xpose.msra.mxu0 %v261
    %292 = vmatpush.xpose.msra.mxu0 %v258
    %293 = vmatpush.xpose.msra.mxu0 %v255
    %294 = vmatmul.f32.gmra.mxu0 %v120
    %v295 = vpop.f32.mrf.mxu0
    %v296 = vadd.f32 %v105, %v295
    %297 = vdwg.mxu0
    %v299 = vsel %vm118, %v54, 0
    %v302 = vsel %vm118, %v55, 0
    %v305 = vsel %vm118, %v56, 0
    %v308 = vsel %vm118, %v57, 0
    %v311 = vsel %vm118, %v58, 0
    %v314 = vsel %vm118, %v59, 0
    %v317 = vsel %vm118, %v60, 0
    %v320 = vsel %vm118, %v61, 0
    %322 = vmatpush.xpose.msra.mxu0 0.0
    %323 = vmatpush.xpose.msra.mxu0 0.0
    %324 = vmatpush.xpose.msra.mxu0 0.0
    %325 = vmatpush.xpose.msra.mxu0 0.0
    %326 = vmatpush.xpose.msra.mxu0 0.0
    %327 = vmatpush.xpose.msra.mxu0 0.0
    %328 = vmatpush.xpose.msra.mxu0 0.0
    %329 = vmatpush.xpose.msra.mxu0 0.0
    %330 = vmatpush.xpose.msra.mxu0 %v320
    %331 = vmatpush.xpose.msra.mxu0 %v317
    %332 = vmatpush.xpose.msra.mxu0 %v314
    %333 = vmatpush.xpose.msra.mxu0 %v311
    %334 = vmatpush.xpose.msra.mxu0 %v308
    %335 = vmatpush.xpose.msra.mxu0 %v305
    %336 = vmatpush.xpose.msra.mxu0 %v302
    %337 = vmatpush.xpose.msra.mxu0 %v299
    %338 = vmatmul.f32.gmra.mxu0 %v120
    %v339 = vpop.f32.mrf.mxu0
    %v340 = vadd.f32 %v106, %v339
    %341 = vdwg.mxu0
    %v343 = vsel %vm118, %v62, 0
    %v346 = vsel %vm118, %v63, 0
    %v349 = vsel %vm118, %v64, 0
    %v352 = vsel %vm118, %v65, 0
    %v355 = vsel %vm118, %v66, 0
    %v358 = vsel %vm118, %v67, 0
    %v361 = vsel %vm118, %v68, 0
    %v364 = vsel %vm118, %v69, 0
    %366 = vmatpush.xpose.msra.mxu0 0.0
    %367 = vmatpush.xpose.msra.mxu0 0.0
    %368 = vmatpush.xpose.msra.mxu0 0.0
    %369 = vmatpush.xpose.msra.mxu0 0.0
    %370 = vmatpush.xpose.msra.mxu0 0.0
    %371 = vmatpush.xpose.msra.mxu0 0.0
    %372 = vmatpush.xpose.msra.mxu0 0.0
    %373 = vmatpush.xpose.msra.mxu0 0.0
    %374 = vmatpush.xpose.msra.mxu0 %v364
    %375 = vmatpush.xpose.msra.mxu0 %v361
    %376 = vmatpush.xpose.msra.mxu0 %v358
    %377 = vmatpush.xpose.msra.mxu0 %v355
    %378 = vmatpush.xpose.msra.mxu0 %v352
    %379 = vmatpush.xpose.msra.mxu0 %v349
    %380 = vmatpush.xpose.msra.mxu0 %v346
    %381 = vmatpush.xpose.msra.mxu0 %v343
    %382 = vmatmul.f32.gmra.mxu0 %v120
    %v383 = vpop.f32.mrf.mxu0
    %v384 = vadd.f32 %v107, %v383
    %385 = vdwg.mxu0
    %v387 = vsel %vm118, %v70, 0
    %v390 = vsel %vm118, %v71, 0
    %v393 = vsel %vm118, %v72, 0
    %v396 = vsel %vm118, %v73, 0
    %v399 = vsel %vm118, %v74, 0
    %v402 = vsel %vm118, %v75, 0
    %v405 = vsel %vm118, %v76, 0
    %v408 = vsel %vm118, %v77, 0
    %410 = vmatpush.xpose.msra.mxu0 0.0
    %411 = vmatpush.xpose.msra.mxu0 0.0
    %412 = vmatpush.xpose.msra.mxu0 0.0
    %413 = vmatpush.xpose.msra.mxu0 0.0
    %414 = vmatpush.xpose.msra.mxu0 0.0
    %415 = vmatpush.xpose.msra.mxu0 0.0
    %416 = vmatpush.xpose.msra.mxu0 0.0
    %417 = vmatpush.xpose.msra.mxu0 0.0
    %418 = vmatpush.xpose.msra.mxu0 %v408
    %419 = vmatpush.xpose.msra.mxu0 %v405
    %420 = vmatpush.xpose.msra.mxu0 %v402
    %421 = vmatpush.xpose.msra.mxu0 %v399
    %422 = vmatpush.xpose.msra.mxu0 %v396
    %423 = vmatpush.xpose.msra.mxu0 %v393
    %424 = vmatpush.xpose.msra.mxu0 %v390
    %425 = vmatpush.xpose.msra.mxu0 %v387
    %426 = vmatmul.f32.gmra.mxu0 %v120
    %v427 = vpop.f32.mrf.mxu0
    %v428 = vadd.f32 %v108, %v427
    %429 = vdwg.mxu0
    %v431 = vsel %vm118, %v78, 0
    %v434 = vsel %vm118, %v79, 0
    %v437 = vsel %vm118, %v80, 0
    %v440 = vsel %vm118, %v81, 0
    %v443 = vsel %vm118, %v82, 0
    %v446 = vsel %vm118, %v83, 0
    %v449 = vsel %vm118, %v84, 0
    %v452 = vsel %vm118, %v85, 0
    %454 = vmatpush.xpose.msra.mxu0 0.0
    %455 = vmatpush.xpose.msra.mxu0 0.0
    %456 = vmatpush.xpose.msra.mxu0 0.0
    %457 = vmatpush.xpose.msra.mxu0 0.0
    %458 = vmatpush.xpose.msra.mxu0 0.0
    %459 = vmatpush.xpose.msra.mxu0 0.0
    %460 = vmatpush.xpose.msra.mxu0 0.0
    %461 = vmatpush.xpose.msra.mxu0 0.0
    %462 = vmatpush.xpose.msra.mxu0 %v452
    %463 = vmatpush.xpose.msra.mxu0 %v449
    %464 = vmatpush.xpose.msra.mxu0 %v446
    %465 = vmatpush.xpose.msra.mxu0 %v443
    %466 = vmatpush.xpose.msra.mxu0 %v440
    %467 = vmatpush.xpose.msra.mxu0 %v437
    %468 = vmatpush.xpose.msra.mxu0 %v434
    %469 = vmatpush.xpose.msra.mxu0 %v431
    %470 = vmatmul.f32.gmra.mxu0 %v120
    %v471 = vpop.f32.mrf.mxu0
    %v472 = vadd.f32 %v109, %v471
    %473 = vdwg.mxu0
    %v474 = vmax.f32 %v164, 0.0
    %v475 = vmax.f32 %v208, 0.0
    %v476 = vmax.f32 %v252, 0.0
    %v477 = vmax.f32 %v296, 0.0
    %v478 = vmax.f32 %v340, 0.0
    %v479 = vmax.f32 %v384, 0.0
    %v480 = vmax.f32 %v428, 0.0
    %v481 = vmax.f32 %v472, 0.0
    %v482 = vld [vmem:[%s3] sm:$0xff]
    %v483 = vld [vmem:[%s3 + $0x8] sm:$0xff]
    %v484 = vld [vmem:[%s3 + $0x10] sm:$0xff]
    %v485 = vld [vmem:[%s3 + $0x18] sm:$0xff]
    %v486 = vld [vmem:[%s3 + $0x20] sm:$0xff]
    %v487 = vld [vmem:[%s3 + $0x28] sm:$0xff]
    %v488 = vld [vmem:[%s3 + $0x30] sm:$0xff]
    %v489 = vld [vmem:[%s3 + $0x38] sm:$0xff]
    %v490 = vld [vmem:[%s3 + $0x40] sm:$0xff]
    %v491 = vld [vmem:[%s3 + $0x48] sm:$0xff]
    %v492 = vld [vmem:[%s3 + $0x50] sm:$0xff]
    %v493 = vld [vmem:[%s3 + $0x58] sm:$0xff]
    %v494 = vld [vmem:[%s3 + $0x60] sm:$0xff]
    %v495 = vld [vmem:[%s3 + $0x68] sm:$0xff]
    %v496 = vld [vmem:[%s3 + $0x70] sm:$0xff]
    %v497 = vld [vmem:[%s3 + $0x78] sm:$0xff]
    %v498 = vld [vmem:[%s3 + $0x80] sm:$0xff]
    %v499 = vld [vmem:[%s3 + $0x88] sm:$0xff]
    %v500 = vld [vmem:[%s3 + $0x90] sm:$0xff]
    %v501 = vld [vmem:[%s3 + $0x98] sm:$0xff]
    %v502 = vld [vmem:[%s3 + $0xa0] sm:$0xff]
    %v503 = vld [vmem:[%s3 + $0xa8] sm:$0xff]
    %v504 = vld [vmem:[%s3 + $0xb0] sm:$0xff]
    %v505 = vld [vmem:[%s3 + $0xb8] sm:$0xff]
    %v506 = vld [vmem:[%s3 + $0xc0] sm:$0xff]
    %v507 = vld [vmem:[%s3 + $0xc8] sm:$0xff]
    %v508 = vld [vmem:[%s3 + $0xd0] sm:$0xff]
    %v509 = vld [vmem:[%s3 + $0xd8] sm:$0xff]
    %v510 = vld [vmem:[%s3 + $0xe0] sm:$0xff]
    %v511 = vld [vmem:[%s3 + $0xe8] sm:$0xff]
    %v512 = vld [vmem:[%s3 + $0xf0] sm:$0xff]
    %v513 = vld [vmem:[%s3 + $0xf8] sm:$0xff]
    %v514 = vld [vmem:[%s3 + $0x100] sm:$0xff]
    %v515 = vld [vmem:[%s3 + $0x108] sm:$0xff]
    %v516 = vld [vmem:[%s3 + $0x110] sm:$0xff]
    %v517 = vld [vmem:[%s3 + $0x118] sm:$0xff]
    %v518 = vld [vmem:[%s3 + $0x120] sm:$0xff]
    %v519 = vld [vmem:[%s3 + $0x128] sm:$0xff]
    %v520 = vld [vmem:[%s3 + $0x130] sm:$0xff]
    %v521 = vld [vmem:[%s3 + $0x138] sm:$0xff]
    %v522 = vld [vmem:[%s3 + $0x140] sm:$0xff]
    %v523 = vld [vmem:[%s3 + $0x148] sm:$0xff]
    %v524 = vld [vmem:[%s3 + $0x150] sm:$0xff]
    %v525 = vld [vmem:[%s3 + $0x158] sm:$0xff]
    %v526 = vld [vmem:[%s3 + $0x160] sm:$0xff]
    %v527 = vld [vmem:[%s3 + $0x168] sm:$0xff]
    %v528 = vld [vmem:[%s3 + $0x170] sm:$0xff]
    %v529 = vld [vmem:[%s3 + $0x178] sm:$0xff]
    %v530 = vld [vmem:[%s3 + $0x180] sm:$0xff]
    %v531 = vld [vmem:[%s3 + $0x188] sm:$0xff]
    %v532 = vld [vmem:[%s3 + $0x190] sm:$0xff]
    %v533 = vld [vmem:[%s3 + $0x198] sm:$0xff]
    %v534 = vld [vmem:[%s3 + $0x1a0] sm:$0xff]
    %v535 = vld [vmem:[%s3 + $0x1a8] sm:$0xff]
    %v536 = vld [vmem:[%s3 + $0x1b0] sm:$0xff]
    %v537 = vld [vmem:[%s3 + $0x1b8] sm:$0xff]
    %v538 = vld [vmem:[%s3 + $0x1c0] sm:$0xff]
    %v539 = vld [vmem:[%s3 + $0x1c8] sm:$0xff]
    %v540 = vld [vmem:[%s3 + $0x1d0] sm:$0xff]
    %v541 = vld [vmem:[%s3 + $0x1d8] sm:$0xff]
    %v542 = vld [vmem:[%s3 + $0x1e0] sm:$0xff]
    %v543 = vld [vmem:[%s3 + $0x1e8] sm:$0xff]
    %v544 = vld [vmem:[%s3 + $0x1f0] sm:$0xff]
    %v545 = vld [vmem:[%s3 + $0x1f8] sm:$0xff]
    %v546 = vld [vmem:[%s3 + $0x200] sm:$0xff]
    %v547 = vld [vmem:[%s3 + $0x208] sm:$0xff]
    %v548 = vld [vmem:[%s3 + $0x210] sm:$0xff]
    %v549 = vld [vmem:[%s3 + $0x218] sm:$0xff]
    %v550 = vld [vmem:[%s3 + $0x220] sm:$0xff]
    %v551 = vld [vmem:[%s3 + $0x228] sm:$0xff]
    %v552 = vld [vmem:[%s3 + $0x230] sm:$0xff]
    %v553 = vld [vmem:[%s3 + $0x238] sm:$0xff]
    %v554 = vld [vmem:[%s3 + $0x240] sm:$0xff]
    %v555 = vld [vmem:[%s3 + $0x248] sm:$0xff]
    %v556 = vld [vmem:[%s3 + $0x250] sm:$0xff]
    %v557 = vld [vmem:[%s3 + $0x258] sm:$0xff]
    %v558 = vld [vmem:[%s3 + $0x260] sm:$0xff]
    %v559 = vld [vmem:[%s3 + $0x268] sm:$0xff]
    %v560 = vld [vmem:[%s3 + $0x270] sm:$0xff]
    %v561 = vld [vmem:[%s3 + $0x278] sm:$0xff]
    %v562 = vld [vmem:[%s3 + $0x280] sm:$0xff]
    %v563 = vld [vmem:[%s3 + $0x288] sm:$0xff]
    %v564 = vld [vmem:[%s3 + $0x290] sm:$0xff]
    %v565 = vld [vmem:[%s3 + $0x298] sm:$0xff]
    %v566 = vld [vmem:[%s3 + $0x2a0] sm:$0xff]
    %v567 = vld [vmem:[%s3 + $0x2a8] sm:$0xff]
    %v568 = vld [vmem:[%s3 + $0x2b0] sm:$0xff]
    %v569 = vld [vmem:[%s3 + $0x2b8] sm:$0xff]
    %v570 = vld [vmem:[%s3 + $0x2c0] sm:$0xff]
    %v571 = vld [vmem:[%s3 + $0x2c8] sm:$0xff]
    %v572 = vld [vmem:[%s3 + $0x2d0] sm:$0xff]
    %v573 = vld [vmem:[%s3 + $0x2d8] sm:$0xff]
    %v574 = vld [vmem:[%s3 + $0x2e0] sm:$0xff]
    %v575 = vld [vmem:[%s3 + $0x2e8] sm:$0xff]
    %v576 = vld [vmem:[%s3 + $0x2f0] sm:$0xff]
    %v577 = vld [vmem:[%s3 + $0x2f8] sm:$0xff]
    %v578 = vld [vmem:[%s3 + $0x300] sm:$0xff]
    %v579 = vld [vmem:[%s3 + $0x308] sm:$0xff]
    %v580 = vld [vmem:[%s3 + $0x310] sm:$0xff]
    %v581 = vld [vmem:[%s3 + $0x318] sm:$0xff]
    %v582 = vld [vmem:[%s3 + $0x320] sm:$0xff]
    %v583 = vld [vmem:[%s3 + $0x328] sm:$0xff]
    %v584 = vld [vmem:[%s3 + $0x330] sm:$0xff]
    %v585 = vld [vmem:[%s3 + $0x338] sm:$0xff]
    %v586 = vld [vmem:[%s3 + $0x340] sm:$0xff]
    %v587 = vld [vmem:[%s3 + $0x348] sm:$0xff]
    %v588 = vld [vmem:[%s3 + $0x350] sm:$0xff]
    %v589 = vld [vmem:[%s3 + $0x358] sm:$0xff]
    %v590 = vld [vmem:[%s3 + $0x360] sm:$0xff]
    %v591 = vld [vmem:[%s3 + $0x368] sm:$0xff]
    %v592 = vld [vmem:[%s3 + $0x370] sm:$0xff]
    %v593 = vld [vmem:[%s3 + $0x378] sm:$0xff]
    %v594 = vld [vmem:[%s3 + $0x380] sm:$0xff]
    %v595 = vld [vmem:[%s3 + $0x388] sm:$0xff]
    %v596 = vld [vmem:[%s3 + $0x390] sm:$0xff]
    %v597 = vld [vmem:[%s3 + $0x398] sm:$0xff]
    %v598 = vld [vmem:[%s3 + $0x3a0] sm:$0xff]
    %v599 = vld [vmem:[%s3 + $0x3a8] sm:$0xff]
    %v600 = vld [vmem:[%s3 + $0x3b0] sm:$0xff]
    %v601 = vld [vmem:[%s3 + $0x3b8] sm:$0xff]
    %v602 = vld [vmem:[%s3 + $0x3c0] sm:$0xff]
    %v603 = vld [vmem:[%s3 + $0x3c8] sm:$0xff]
    %v604 = vld [vmem:[%s3 + $0x3d0] sm:$0xff]
    %v605 = vld [vmem:[%s3 + $0x3d8] sm:$0xff]
    %v606 = vld [vmem:[%s3 + $0x3e0] sm:$0xff]
    %v607 = vld [vmem:[%s3 + $0x3e8] sm:$0xff]
    %v608 = vld [vmem:[%s3 + $0x3f0] sm:$0xff]
    %v609 = vld [vmem:[%s3 + $0x3f8] sm:$0xff]
    %v610 = vld [vmem:[%s4] sm:$0x1]
    %v611 = vld [vmem:[%s4 + $0x1] sm:$0x1]
    %v612 = vld [vmem:[%s4 + $0x2] sm:$0x1]
    %v613 = vld [vmem:[%s4 + $0x3] sm:$0x1]
    %v614 = vld [vmem:[%s4 + $0x4] sm:$0x1]
    %v615 = vld [vmem:[%s4 + $0x5] sm:$0x1]
    %v616 = vld [vmem:[%s4 + $0x6] sm:$0x1]
    %v617 = vld [vmem:[%s4 + $0x7] sm:$0x1]
    %v626 = vperm.slane %v610, 0
    %v627 = vperm.slane %v611, 0
    %v628 = vperm.slane %v612, 0
    %v629 = vperm.slane %v613, 0
    %v630 = vperm.slane %v614, 0
    %v631 = vperm.slane %v615, 0
    %v632 = vperm.slane %v616, 0
    %v633 = vperm.slane %v617, 0
    %vm642 = vcmask 523264
    %v644 = vsel %vm642, %v474, 0
    %v647 = vsel %vm642, %v482, 0
    %v650 = vsel %vm642, %v483, 0
    %v653 = vsel %vm642, %v484, 0
    %v656 = vsel %vm642, %v485, 0
    %v659 = vsel %vm642, %v486, 0
    %v662 = vsel %vm642, %v487, 0
    %v665 = vsel %vm642, %v488, 0
    %v668 = vsel %vm642, %v489, 0
    %v671 = vsel %vm642, %v490, 0
    %v674 = vsel %vm642, %v491, 0
    %v677 = vsel %vm642, %v492, 0
    %v680 = vsel %vm642, %v493, 0
    %v683 = vsel %vm642, %v494, 0
    %v686 = vsel %vm642, %v495, 0
    %v689 = vsel %vm642, %v496, 0
    %v692 = vsel %vm642, %v497, 0
    %694 = vmatpush.xpose.msra.mxu0 %v692
    %695 = vmatpush.xpose.msra.mxu0 %v689
    %696 = vmatpush.xpose.msra.mxu0 %v686
    %697 = vmatpush.xpose.msra.mxu0 %v683
    %698 = vmatpush.xpose.msra.mxu0 %v680
    %699 = vmatpush.xpose.msra.mxu0 %v677
    %700 = vmatpush.xpose.msra.mxu0 %v674
    %701 = vmatpush.xpose.msra.mxu0 %v671
    %702 = vmatpush.xpose.msra.mxu0 %v668
    %703 = vmatpush.xpose.msra.mxu0 %v665
    %704 = vmatpush.xpose.msra.mxu0 %v662
    %705 = vmatpush.xpose.msra.mxu0 %v659
    %706 = vmatpush.xpose.msra.mxu0 %v656
    %707 = vmatpush.xpose.msra.mxu0 %v653
    %708 = vmatpush.xpose.msra.mxu0 %v650
    %709 = vmatpush.xpose.msra.mxu0 %v647
    %710 = vmatmul.f32.gmra.mxu0 %v644
    %v711 = vpop.f32.mrf.mxu0
    %v712 = vadd.f32 %v626, %v711
    %713 = vdwg.mxu0
    %v715 = vsel %vm642, %v475, 0
    %v718 = vsel %vm642, %v498, 0
    %v721 = vsel %vm642, %v499, 0
    %v724 = vsel %vm642, %v500, 0
    %v727 = vsel %vm642, %v501, 0
    %v730 = vsel %vm642, %v502, 0
    %v733 = vsel %vm642, %v503, 0
    %v736 = vsel %vm642, %v504, 0
    %v739 = vsel %vm642, %v505, 0
    %v742 = vsel %vm642, %v506, 0
    %v745 = vsel %vm642, %v507, 0
    %v748 = vsel %vm642, %v508, 0
    %v751 = vsel %vm642, %v509, 0
    %v754 = vsel %vm642, %v510, 0
    %v757 = vsel %vm642, %v511, 0
    %v760 = vsel %vm642, %v512, 0
    %v763 = vsel %vm642, %v513, 0
    %765 = vmatpush.xpose.msra.mxu0 %v763
    %766 = vmatpush.xpose.msra.mxu0 %v760
    %767 = vmatpush.xpose.msra.mxu0 %v757
    %768 = vmatpush.xpose.msra.mxu0 %v754
    %769 = vmatpush.xpose.msra.mxu0 %v751
    %770 = vmatpush.xpose.msra.mxu0 %v748
    %771 = vmatpush.xpose.msra.mxu0 %v745
    %772 = vmatpush.xpose.msra.mxu0 %v742
    %773 = vmatpush.xpose.msra.mxu0 %v739
    %774 = vmatpush.xpose.msra.mxu0 %v736
    %775 = vmatpush.xpose.msra.mxu0 %v733
    %776 = vmatpush.xpose.msra.mxu0 %v730
    %777 = vmatpush.xpose.msra.mxu0 %v727
    %778 = vmatpush.xpose.msra.mxu0 %v724
    %779 = vmatpush.xpose.msra.mxu0 %v721
    %780 = vmatpush.xpose.msra.mxu0 %v718
    %781 = vmatmul.f32.gmra.mxu0 %v715
    %v782 = vpop.f32.mrf.mxu0
    %v783 = vadd.f32 %v627, %v782
    %784 = vdwg.mxu0
    %v786 = vsel %vm642, %v476, 0
    %v789 = vsel %vm642, %v514, 0
    %v792 = vsel %vm642, %v515, 0
    %v795 = vsel %vm642, %v516, 0
    %v798 = vsel %vm642, %v517, 0
    %v801 = vsel %vm642, %v518, 0
    %v804 = vsel %vm642, %v519, 0
    %v807 = vsel %vm642, %v520, 0
    %v810 = vsel %vm642, %v521, 0
    %v813 = vsel %vm642, %v522, 0
    %v816 = vsel %vm642, %v523, 0
    %v819 = vsel %vm642, %v524, 0
    %v822 = vsel %vm642, %v525, 0
    %v825 = vsel %vm642, %v526, 0
    %v828 = vsel %vm642, %v527, 0
    %v831 = vsel %vm642, %v528, 0
    %v834 = vsel %vm642, %v529, 0
    %836 = vmatpush.xpose.msra.mxu0 %v834
    %837 = vmatpush.xpose.msra.mxu0 %v831
    %838 = vmatpush.xpose.msra.mxu0 %v828
    %839 = vmatpush.xpose.msra.mxu0 %v825
    %840 = vmatpush.xpose.msra.mxu0 %v822
    %841 = vmatpush.xpose.msra.mxu0 %v819
    %842 = vmatpush.xpose.msra.mxu0 %v816
    %843 = vmatpush.xpose.msra.mxu0 %v813
    %844 = vmatpush.xpose.msra.mxu0 %v810
    %845 = vmatpush.xpose.msra.mxu0 %v807
    %846 = vmatpush.xpose.msra.mxu0 %v804
    %847 = vmatpush.xpose.msra.mxu0 %v801
    %848 = vmatpush.xpose.msra.mxu0 %v798
    %849 = vmatpush.xpose.msra.mxu0 %v795
    %850 = vmatpush.xpose.msra.mxu0 %v792
    %851 = vmatpush.xpose.msra.mxu0 %v789
    %852 = vmatmul.f32.gmra.mxu0 %v786
    %v853 = vpop.f32.mrf.mxu0
    %v854 = vadd.f32 %v628, %v853
    %855 = vdwg.mxu0
    %v857 = vsel %vm642, %v477, 0
    %v860 = vsel %vm642, %v530, 0
    %v863 = vsel %vm642, %v531, 0
    %v866 = vsel %vm642, %v532, 0
    %v869 = vsel %vm642, %v533, 0
    %v872 = vsel %vm642, %v534, 0
    %v875 = vsel %vm642, %v535, 0
    %v878 = vsel %vm642, %v536, 0
    %v881 = vsel %vm642, %v537, 0
    %v884 = vsel %vm642, %v538, 0
    %v887 = vsel %vm642, %v539, 0
    %v890 = vsel %vm642, %v540, 0
    %v893 = vsel %vm642, %v541, 0
    %v896 = vsel %vm642, %v542, 0
    %v899 = vsel %vm642, %v543, 0
    %v902 = vsel %vm642, %v544, 0
    %v905 = vsel %vm642, %v545, 0
    %907 = vmatpush.xpose.msra.mxu0 %v905
    %908 = vmatpush.xpose.msra.mxu0 %v902
    %909 = vmatpush.xpose.msra.mxu0 %v899
    %910 = vmatpush.xpose.msra.mxu0 %v896
    %911 = vmatpush.xpose.msra.mxu0 %v893
    %912 = vmatpush.xpose.msra.mxu0 %v890
    %913 = vmatpush.xpose.msra.mxu0 %v887
    %914 = vmatpush.xpose.msra.mxu0 %v884
    %915 = vmatpush.xpose.msra.mxu0 %v881
    %916 = vmatpush.xpose.msra.mxu0 %v878
    %917 = vmatpush.xpose.msra.mxu0 %v875
    %918 = vmatpush.xpose.msra.mxu0 %v872
    %919 = vmatpush.xpose.msra.mxu0 %v869
    %920 = vmatpush.xpose.msra.mxu0 %v866
    %921 = vmatpush.xpose.msra.mxu0 %v863
    %922 = vmatpush.xpose.msra.mxu0 %v860
    %923 = vmatmul.f32.gmra.mxu0 %v857
    %v924 = vpop.f32.mrf.mxu0
    %v925 = vadd.f32 %v629, %v924
    %926 = vdwg.mxu0
    %v928 = vsel %vm642, %v478, 0
    %v931 = vsel %vm642, %v546, 0
    %v934 = vsel %vm642, %v547, 0
    %v937 = vsel %vm642, %v548, 0
    %v940 = vsel %vm642, %v549, 0
    %v943 = vsel %vm642, %v550, 0
    %v946 = vsel %vm642, %v551, 0
    %v949 = vsel %vm642, %v552, 0
    %v952 = vsel %vm642, %v553, 0
    %v955 = vsel %vm642, %v554, 0
    %v958 = vsel %vm642, %v555, 0
    %v961 = vsel %vm642, %v556, 0
    %v964 = vsel %vm642, %v557, 0
    %v967 = vsel %vm642, %v558, 0
    %v970 = vsel %vm642, %v559, 0
    %v973 = vsel %vm642, %v560, 0
    %v976 = vsel %vm642, %v561, 0
    %978 = vmatpush.xpose.msra.mxu0 %v976
    %979 = vmatpush.xpose.msra.mxu0 %v973
    %980 = vmatpush.xpose.msra.mxu0 %v970
    %981 = vmatpush.xpose.msra.mxu0 %v967
    %982 = vmatpush.xpose.msra.mxu0 %v964
    %983 = vmatpush.xpose.msra.mxu0 %v961
    %984 = vmatpush.xpose.msra.mxu0 %v958
    %985 = vmatpush.xpose.msra.mxu0 %v955
    %986 = vmatpush.xpose.msra.mxu0 %v952
    %987 = vmatpush.xpose.msra.mxu0 %v949
    %988 = vmatpush.xpose.msra.mxu0 %v946
    %989 = vmatpush.xpose.msra.mxu0 %v943
    %990 = vmatpush.xpose.msra.mxu0 %v940
    %991 = vmatpush.xpose.msra.mxu0 %v937
    %992 = vmatpush.xpose.msra.mxu0 %v934
    %993 = vmatpush.xpose.msra.mxu0 %v931
    %994 = vmatmul.f32.gmra.mxu0 %v928
    %v995 = vpop.f32.mrf.mxu0
    %v996 = vadd.f32 %v630, %v995
    %997 = vdwg.mxu0
    %v999 = vsel %vm642, %v479, 0
    %v1002 = vsel %vm642, %v562, 0
    %v1005 = vsel %vm642, %v563, 0
    %v1008 = vsel %vm642, %v564, 0
    %v1011 = vsel %vm642, %v565, 0
    %v1014 = vsel %vm642, %v566, 0
    %v1017 = vsel %vm642, %v567, 0
    %v1020 = vsel %vm642, %v568, 0
    %v1023 = vsel %vm642, %v569, 0
    %v1026 = vsel %vm642, %v570, 0
    %v1029 = vsel %vm642, %v571, 0
    %v1032 = vsel %vm642, %v572, 0
    %v1035 = vsel %vm642, %v573, 0
    %v1038 = vsel %vm642, %v574, 0
    %v1041 = vsel %vm642, %v575, 0
    %v1044 = vsel %vm642, %v576, 0
    %v1047 = vsel %vm642, %v577, 0
    %1049 = vmatpush.xpose.msra.mxu0 %v1047
    %1050 = vmatpush.xpose.msra.mxu0 %v1044
    %1051 = vmatpush.xpose.msra.mxu0 %v1041
    %1052 = vmatpush.xpose.msra.mxu0 %v1038
    %1053 = vmatpush.xpose.msra.mxu0 %v1035
    %1054 = vmatpush.xpose.msra.mxu0 %v1032
    %1055 = vmatpush.xpose.msra.mxu0 %v1029
    %1056 = vmatpush.xpose.msra.mxu0 %v1026
    %1057 = vmatpush.xpose.msra.mxu0 %v1023
    %1058 = vmatpush.xpose.msra.mxu0 %v1020
    %1059 = vmatpush.xpose.msra.mxu0 %v1017
    %1060 = vmatpush.xpose.msra.mxu0 %v1014
    %1061 = vmatpush.xpose.msra.mxu0 %v1011
    %1062 = vmatpush.xpose.msra.mxu0 %v1008
    %1063 = vmatpush.xpose.msra.mxu0 %v1005
    %1064 = vmatpush.xpose.msra.mxu0 %v1002
    %1065 = vmatmul.f32.gmra.mxu0 %v999
    %v1066 = vpop.f32.mrf.mxu0
    %v1067 = vadd.f32 %v631, %v1066
    %1068 = vdwg.mxu0
    %v1070 = vsel %vm642, %v480, 0
    %v1073 = vsel %vm642, %v578, 0
    %v1076 = vsel %vm642, %v579, 0
    %v1079 = vsel %vm642, %v580, 0
    %v1082 = vsel %vm642, %v581, 0
    %v1085 = vsel %vm642, %v582, 0
    %v1088 = vsel %vm642, %v583, 0
    %v1091 = vsel %vm642, %v584, 0
    %v1094 = vsel %vm642, %v585, 0
    %v1097 = vsel %vm642, %v586, 0
    %v1100 = vsel %vm642, %v587, 0
    %v1103 = vsel %vm642, %v588, 0
    %v1106 = vsel %vm642, %v589, 0
    %v1109 = vsel %vm642, %v590, 0
    %v1112 = vsel %vm642, %v591, 0
    %v1115 = vsel %vm642, %v592, 0
    %v1118 = vsel %vm642, %v593, 0
    %1120 = vmatpush.xpose.msra.mxu0 %v1118
    %1121 = vmatpush.xpose.msra.mxu0 %v1115
    %1122 = vmatpush.xpose.msra.mxu0 %v1112
    %1123 = vmatpush.xpose.msra.mxu0 %v1109
    %1124 = vmatpush.xpose.msra.mxu0 %v1106
    %1125 = vmatpush.xpose.msra.mxu0 %v1103
    %1126 = vmatpush.xpose.msra.mxu0 %v1100
    %1127 = vmatpush.xpose.msra.mxu0 %v1097
    %1128 = vmatpush.xpose.msra.mxu0 %v1094
    %1129 = vmatpush.xpose.msra.mxu0 %v1091
    %1130 = vmatpush.xpose.msra.mxu0 %v1088
    %1131 = vmatpush.xpose.msra.mxu0 %v1085
    %1132 = vmatpush.xpose.msra.mxu0 %v1082
    %1133 = vmatpush.xpose.msra.mxu0 %v1079
    %1134 = vmatpush.xpose.msra.mxu0 %v1076
    %1135 = vmatpush.xpose.msra.mxu0 %v1073
    %1136 = vmatmul.f32.gmra.mxu0 %v1070
    %v1137 = vpop.f32.mrf.mxu0
    %v1138 = vadd.f32 %v632, %v1137
    %1139 = vdwg.mxu0
    %v1141 = vsel %vm642, %v481, 0
    %v1144 = vsel %vm642, %v594, 0
    %v1147 = vsel %vm642, %v595, 0
    %v1150 = vsel %vm642, %v596, 0
    %v1153 = vsel %vm642, %v597, 0
    %v1156 = vsel %vm642, %v598, 0
    %v1159 = vsel %vm642, %v599, 0
    %v1162 = vsel %vm642, %v600, 0
    %v1165 = vsel %vm642, %v601, 0
    %v1168 = vsel %vm642, %v602, 0
    %v1171 = vsel %vm642, %v603, 0
    %v1174 = vsel %vm642, %v604, 0
    %v1177 = vsel %vm642, %v605, 0
    %v1180 = vsel %vm642, %v606, 0
    %v1183 = vsel %vm642, %v607, 0
    %v1186 = vsel %vm642, %v608, 0
    %v1189 = vsel %vm642, %v609, 0
    %1191 = vmatpush.xpose.msra.mxu0 %v1189
    %1192 = vmatpush.xpose.msra.mxu0 %v1186
    %1193 = vmatpush.xpose.msra.mxu0 %v1183
    %1194 = vmatpush.xpose.msra.mxu0 %v1180
    %1195 = vmatpush.xpose.msra.mxu0 %v1177
    %1196 = vmatpush.xpose.msra.mxu0 %v1174
    %1197 = vmatpush.xpose.msra.mxu0 %v1171
    %1198 = vmatpush.xpose.msra.mxu0 %v1168
    %1199 = vmatpush.xpose.msra.mxu0 %v1165
    %1200 = vmatpush.xpose.msra.mxu0 %v1162
    %1201 = vmatpush.xpose.msra.mxu0 %v1159
    %1202 = vmatpush.xpose.msra.mxu0 %v1156
    %1203 = vmatpush.xpose.msra.mxu0 %v1153
    %1204 = vmatpush.xpose.msra.mxu0 %v1150
    %1205 = vmatpush.xpose.msra.mxu0 %v1147
    %1206 = vmatpush.xpose.msra.mxu0 %v1144
    %1207 = vmatmul.f32.gmra.mxu0 %v1141
    %v1208 = vpop.f32.mrf.mxu0
    %v1209 = vadd.f32 %v633, %v1208
    %1210 = vdwg.mxu0
    %1211 = vst [vmem:[#allocation2] sm:$0xff] %v712
    %1212 = vst [vmem:[#allocation2 + $0x8] sm:$0xff] %v783
    %1213 = vst [vmem:[#allocation2 + $0x10] sm:$0xff] %v854
    %1214 = vst [vmem:[#allocation2 + $0x18] sm:$0xff] %v925
    %1215 = vst [vmem:[#allocation2 + $0x20] sm:$0xff] %v996
    %1216 = vst [vmem:[#allocation2 + $0x28] sm:$0xff] %v1067
    %1217 = vst [vmem:[#allocation2 + $0x30] sm:$0xff] %v1138
    %1218 = vst [vmem:[#allocation2 + $0x38] sm:$0xff] %v1209
    // Predicated region
    $region22: #{_forward_batched_impl.1} parent=1 // pred_check
      _
    $region23: #{_forward_batched_impl.1} parent=1 // pred_check_branch
      %1220 = sbr.rel (0) target = $region25
    $region24: #{_forward_batched_impl.1} parent=1 // pred_region
      %1222 = vsyncadd [#allocation3], 0
      %s1223 = sshll.u32 [#allocation2], 4
      %s1224 = int_to_ptr.vmem [resolvable:$true] %s1223
      %s1225 = sshll.u32 %s5, 4
      %s1226 = int_to_ptr.hbm [resolvable:$true] %s1225
      %1231 = dma.vmem_to_hbm [thread:$0]  %s1224, 1024, %s1226, [#allocation3], 128, 128, 8
    $region25: #{_forward_batched_impl.1} parent=1 // pred_fallthru
      _
    // Predicated region
    $region26: #{_forward_batched_impl.1} parent=1 // pred_check
      _
    $region27: #{_forward_batched_impl.1} parent=1 // pred_check_branch
      %1233 = sbr.rel (0) target = $region29
    $region28: #{_forward_batched_impl.1} parent=1 // pred_region
      %1235 = dma.done [#allocation3], 1024
    $region29: #{_forward_batched_impl.1} parent=1 // pred_fallthru
      _
    %1236 = vsyncpa [#allocation3], 1

</llo_original>
